<compile_context>
chip_gen: v5e
topology: v5e:2x2
jax: 0.10.0
libtpu: 0.0.40
codegen_flags: <defaults>
</compile_context>

<pallas_src>
import jax
import jax.numpy as jnp
from jax.experimental import pallas as pl
from jax.experimental.pallas import tpu as pltpu


# ----------------------------------------------------------------------------
# Kernel: 3 MXU dots total, 2 on the serial critical path.
# ----------------------------------------------------------------------------
def gru_cell_kernel(
    xs_ref,   # (Bp, K)       = [x | st | 1]            (bf16)
    h_ref,    # (Bp, Hp)      previous hidden state      (f32)
    wp_ref,   # (K, 2*Hp)     = [proj1 | proj2] (bias rows folded in, bf16)
    wg_ref,   # (2, Hp, Hp)   = [w1h@wf1c, w2h@wf2c]     (bf16)
    out_ref,  # (Bp, Hp)                                  (f32)
):
    hp = h_ref.shape[-1]
    h = h_ref[...]                      # f32 for the elementwise path
    h_bf = h.astype(wg_ref.dtype)       # bf16 copy for the MXU

    # Off-critical-path stacked projection: one MXU push for both gates'
    # x/st/bias contributions.
    proj = jnp.dot(xs_ref[...], wp_ref[...],
                   preferred_element_type=jnp.float32)          # (Bp, 2Hp)

    # fusion_feature1 (cat_linear1 folded through fusion_linear1)
    fusion1 = proj[:, :hp] + jnp.dot(
        h_bf, wg_ref[0], preferred_element_type=jnp.float32)
    z_t = jax.nn.sigmoid(fusion1)
    r_t = z_t  # reference applies sigmoid to the same tensor twice

    # fusion_feature2 (cat_linear2 folded through fusion_linear2)
    rh = (r_t * h).astype(wg_ref.dtype)
    fusion2 = proj[:, hp:] + jnp.dot(
        rh, wg_ref[1], preferred_element_type=jnp.float32)
    h_tilde = jnp.tanh(fusion2)

    # (1 - z) * h + z * h_tilde  ==  h + z * (h_tilde - h)
    out_ref[...] = h + z_t * (h_tilde - h)


# ----------------------------------------------------------------------------
# Wrapper
# ----------------------------------------------------------------------------
def _round_up(n, m):
    return ((n + m - 1) // m) * m


def _vmem_full_spec(shape):
    return pl.BlockSpec(
        shape,
        lambda: (0,) * len(shape),
        memory_space=pltpu.MemorySpace.VMEM,
    )


def custom_gru_cell(x, h_prev, st_feature, packed):
    """x:(B,Din) h_prev:(B,H) st_feature:(B,F) -> (B,H)."""
    B, H = h_prev.shape
    Hp = packed["wg"].shape[-1]
    Bp = _round_up(max(B, 8), 8)
    wdtype = packed["wp"].dtype

    # [x | st | 1] with the ones column feeding the folded biases.
    xs = jnp.concatenate(
        [x, st_feature, jnp.ones((B, 1), x.dtype)], axis=1)
    xs = jnp.pad(xs, ((0, Bp - B), (0, 0))).astype(wdtype)       # bf16 MXU LHS
    hpad = jnp.pad(h_prev, ((0, Bp - B), (0, Hp - H)))           # f32

    operands = (xs, hpad, packed["wp"], packed["wg"])
    out = pl.pallas_call(
        gru_cell_kernel,
        out_shape=jax.ShapeDtypeStruct((Bp, Hp), jnp.float32),
        in_specs=[_vmem_full_spec(o.shape) for o in operands],
        out_specs=_vmem_full_spec((Bp, Hp)),
    )(*operands)
    return out[:B, :H]


# ----------------------------------------------------------------------------
# Parameters
# ----------------------------------------------------------------------------
def init_params(key, input_dim, feature_dim, hidden_dim):
    """nn.Linear-style init; weights stored (in_features, out_features)."""
    ks = jax.random.split(key, 8)

    def linear(kw, kb, fan_in, fan_out):
        bound = 1.0 / jnp.sqrt(fan_in)
        w = jax.random.uniform(kw, (fan_in, fan_out), jnp.float32, -bound, bound)
        b = jax.random.uniform(kb, (fan_out,), jnp.float32, -bound, bound)
        return w, b

    # cat_linear1 input order: [x ; h_prev]
    w1, b1 = linear(ks[0], ks[1], input_dim + hidden_dim, hidden_dim)
    # fusion_linear1 input order: [cat_feature1 ; st_feature]
    wf1, bf1 = linear(ks[2], ks[3], hidden_dim + feature_dim, hidden_dim)
    w2, b2 = linear(ks[4], ks[5], input_dim + hidden_dim, hidden_dim)
    wf2, bf2 = linear(ks[6], ks[7], hidden_dim + feature_dim, hidden_dim)

    return {"w1": w1, "b1": b1, "wf1": wf1, "bf1": bf1,
            "w2": w2, "b2": b2, "wf2": wf2, "bf2": bf2}


def pack_params(p, input_dim, feature_dim, hidden_dim, dtype=jnp.bfloat16):
    """Fold cat-linear through fusion-linear, fold biases, stack, pad, cast."""
    H = hidden_dim
    Hp = _round_up(H, 128)

    w1x, w1h = p["w1"][:input_dim], p["w1"][input_dim:]
    w2x, w2h = p["w2"][:input_dim], p["w2"][input_dim:]
    wf1c, wf1s = p["wf1"][:H], p["wf1"][H:]
    wf2c, wf2s = p["wf2"][:H], p["wf2"][H:]

    # Fold (in f32) the cat-linear weights/biases through the fusion-linear.
    w1x_f = w1x @ wf1c                       # (Din, H)
    w2x_f = w2x @ wf2c
    W1 = w1h @ wf1c                          # (H, H)
    W2 = w2h @ wf2c
    b1_f = p["bf1"] + p["b1"] @ wf1c         # (H,)
    b2_f = p["bf2"] + p["b2"] @ wf2c

    # Projection weight for [x | st | 1]: rows = [w?x_f ; wf?s ; bias].
    proj1 = jnp.concatenate([w1x_f, wf1s, b1_f[None, :]], axis=0)  # (K, H)
    proj2 = jnp.concatenate([w2x_f, wf2s, b2_f[None, :]], axis=0)

    def pad_cols(w):
        return jnp.pad(w, ((0, 0), (0, Hp - H)))

    def pad_hh(w):
        return jnp.pad(w, ((0, Hp - H), (0, Hp - H)))

    wp = jnp.concatenate([pad_cols(proj1), pad_cols(proj2)], axis=1)  # (K, 2Hp)
    wg = jnp.stack([pad_hh(W1), pad_hh(W2)])                          # (2, Hp, Hp)

    return {"wp": wp.astype(dtype), "wg": wg.astype(dtype)}


# ----------------------------------------------------------------------------
# Pure-JAX reference (mirrors the PyTorch forward exactly, f32)
# ----------------------------------------------------------------------------
def reference_gru_cell(x, h_prev, st, p):
    cat1 = jnp.concatenate([x, h_prev], axis=1) @ p["w1"] + p["b1"]
    fusion1 = jnp.concatenate([cat1, st], axis=1) @ p["wf1"] + p["bf1"]
    z_t = jax.nn.sigmoid(fusion1)
    r_t = jax.nn.sigmoid(fusion1)
    cat2 = jnp.concatenate([x, r_t * h_prev], axis=1) @ p["w2"] + p["b2"]
    fusion2 = jnp.concatenate([cat2, st], axis=1) @ p["wf2"] + p["bf2"]
    h_tilde = jnp.tanh(fusion2)
    return (1.0 - z_t) * h_prev + z_t * h_tilde


# ----------------------------------------------------------------------------
# Main
# ----------------------------------------------------------------------------
if __name__ == "__main__":
    B, input_dim, feature_dim, hidden_dim = 4, 8, 16, 32

    key = jax.random.PRNGKey(0)
    k_x, k_h, k_s, k_p = jax.random.split(key, 4)

    x = jax.random.normal(k_x, (B, input_dim), jnp.float32)
    h_prev = jax.random.normal(k_h, (B, hidden_dim), jnp.float32)
    st_feature = jax.random.normal(k_s, (B, feature_dim), jnp.float32)

    params = init_params(k_p, input_dim, feature_dim, hidden_dim)
    packed = pack_params(params, input_dim, feature_dim, hidden_dim)

    h_t = custom_gru_cell(x, h_prev, st_feature, packed)
    jax.block_until_ready(h_t)

    h_ref = reference_gru_cell(x, h_prev, st_feature, params)
    assert h_t.shape == (B, hidden_dim)
    # bf16 weights / MXU LHS vs. pure-f32 reference -> loosened tolerance.
    assert jnp.allclose(h_t, h_ref, atol=3e-2, rtol=3e-2), "mismatch vs reference"

    print("KERNEL_OK")
</pallas_src>

<mosaic_0001>
module attributes {stable_mosaic.version = 11 : i64} {
  func.func @gru_cell_kernel(%arg0: memref<8x25xbf16, #tpu.memory_space<vmem>>, %arg1: memref<8x128xf32, #tpu.memory_space<vmem>>, %arg2: memref<25x256xbf16, #tpu.memory_space<vmem>>, %arg3: memref<2x128x128xbf16, #tpu.memory_space<vmem>>, %arg4: memref<8x128xf32, #tpu.memory_space<vmem>>) attributes {dimension_semantics = [], scalar_prefetch = 0 : i64, scratch_operands = 0 : i64, tpu.core_type = #tpu.core_type<tc>} {
    %c0 = arith.constant 0 : index
    %c0_0 = arith.constant 0 : index
    %0 = vector.load %arg1[%c0, %c0_0] : memref<8x128xf32, #tpu.memory_space<vmem>>, vector<8x128xf32>
    %1 = arith.truncf %0 : vector<8x128xf32> to vector<8x128xbf16>
    %c0_1 = arith.constant 0 : index
    %c0_2 = arith.constant 0 : index
    %2 = vector.load %arg0[%c0_1, %c0_2] : memref<8x25xbf16, #tpu.memory_space<vmem>>, vector<8x25xbf16>
    %c0_3 = arith.constant 0 : index
    %c0_4 = arith.constant 0 : index
    %3 = vector.load %arg2[%c0_3, %c0_4] : memref<25x256xbf16, #tpu.memory_space<vmem>>, vector<25x256xbf16>
    %cst = arith.constant dense<0.000000e+00> : vector<8x256xf32>
    %4 = tpu.matmul %2, %3, %cst {dimension_numbers = #tpu.dot_dimension_numbers<[1], [0], [0], [1], [0, 0, 1, 1], [], []>} : vector<8x25xbf16>, vector<25x256xbf16>, vector<8x256xf32> -> vector<8x256xf32>
    %5 = vector.extract_strided_slice %4 {offsets = [0, 0], sizes = [8, 128], strides = [1, 1]} : vector<8x256xf32> to vector<8x128xf32>
    %c0_5 = arith.constant 0 : index
    %c0_6 = arith.constant 0 : index
    %c0_7 = arith.constant 0 : index
    %6 = vector.load %arg3[%c0_5, %c0_6, %c0_7] : memref<2x128x128xbf16, #tpu.memory_space<vmem>>, vector<1x128x128xbf16>
    %7 = vector.shape_cast %6 : vector<1x128x128xbf16> to vector<128x128xbf16>
    %cst_8 = arith.constant dense<0.000000e+00> : vector<8x128xf32>
    %8 = tpu.matmul %1, %7, %cst_8 {dimension_numbers = #tpu.dot_dimension_numbers<[1], [0], [0], [1], [0, 0, 1, 1], [], []>} : vector<8x128xbf16>, vector<128x128xbf16>, vector<8x128xf32> -> vector<8x128xf32>
    %9 = arith.addf %5, %8 : vector<8x128xf32>
    %10 = arith.negf %9 : vector<8x128xf32>
    %11 = math.exp %10 : vector<8x128xf32>
    %cst_9 = arith.constant 1.000000e+00 : f32
    %12 = vector.broadcast %cst_9 : f32 to vector<8x128xf32>
    %13 = arith.addf %12, %11 : vector<8x128xf32>
    %14 = arith.divf %12, %13 : vector<8x128xf32>
    %15 = arith.mulf %14, %0 : vector<8x128xf32>
    %16 = arith.truncf %15 : vector<8x128xf32> to vector<8x128xbf16>
    %17 = vector.extract_strided_slice %4 {offsets = [0, 128], sizes = [8, 128], strides = [1, 1]} : vector<8x256xf32> to vector<8x128xf32>
    %c1 = arith.constant 1 : index
    %c0_10 = arith.constant 0 : index
    %c0_11 = arith.constant 0 : index
    %18 = vector.load %arg3[%c1, %c0_10, %c0_11] : memref<2x128x128xbf16, #tpu.memory_space<vmem>>, vector<1x128x128xbf16>
    %19 = vector.shape_cast %18 : vector<1x128x128xbf16> to vector<128x128xbf16>
    %cst_12 = arith.constant dense<0.000000e+00> : vector<8x128xf32>
    %20 = tpu.matmul %16, %19, %cst_12 {dimension_numbers = #tpu.dot_dimension_numbers<[1], [0], [0], [1], [0, 0, 1, 1], [], []>} : vector<8x128xbf16>, vector<128x128xbf16>, vector<8x128xf32> -> vector<8x128xf32>
    %21 = arith.addf %17, %20 : vector<8x128xf32>
    %22 = math.tanh %21 : vector<8x128xf32>
    %23 = arith.subf %22, %0 : vector<8x128xf32>
    %24 = arith.mulf %14, %23 : vector<8x128xf32>
    %25 = arith.addf %0, %24 : vector<8x128xf32>
    %c0_13 = arith.constant 0 : index
    %c0_14 = arith.constant 0 : index
    %26 = vector.load %arg4[%c0_13, %c0_14] : memref<8x128xf32, #tpu.memory_space<vmem>>, vector<8x128xf32>
    tpu.vector_store %arg4[%c0_13, %c0_14], %25 {strides = array<i32>} : memref<8x128xf32, #tpu.memory_space<vmem>>, vector<8x128xf32>,
    return
  }
}

</mosaic_0001>

<llo_original>
// kernel: tpu_custom_call.1
$region0: #{tpu_custom_call.1}
  #allocation0 [shape = 'u32[]', space=smem, size = 0x4, offset = 0x4, fixed_abs, tag = 'smem constant byte address 0x4 - core index']
  #allocation1 [shape = 'u32[72,128]{1,0:T(1,128)}', space=vmem, size = 0x9000, scoped, tag = 'internal scratch']
  %s0 = inlined_call_operand.hbm [shape: bf16[8,25], index: 0, kind: input, shape index: {}]
  %s1 = inlined_call_operand.hbm [shape: f32[8,128], index: 1, kind: input, shape index: {}]
  %s2 = inlined_call_operand.hbm [shape: bf16[25,256], index: 2, kind: input, shape index: {}]
  %s3 = inlined_call_operand.hbm [shape: bf16[2,128,128], index: 3, kind: input, shape index: {}]
  %s4 = inlined_call_operand.hbm [shape: f32[8,128], index: 4, kind: output, shape index: {}]
  %s5 = sld [smem:[#allocation0]]
  $region42: #{tpu_custom_call.1} parent=0
    _
  %s7 = ssub.s32 1, %s5
  %s8 = scalar_select 0, %s7, %s5
  $region1: #{tpu_custom_call.1} parent=0
    #allocation2 [shape = 'u8[2048]{0}', space=vmem, size = 0x800, scoped, tag = 'input window, operand 0, single buffered']
    #allocation3 [shape = 's32[1]{0}', space=sflag, size = 0x4, scoped, tag = 'scoped memory for tpu_custom_call.1']
    #allocation4 [shape = 's32[1]{0}', space=sflag, size = 0x4, scoped, tag = 'scoped memory for tpu_custom_call.1']
    #allocation5 [shape = 'u8[4096]{0}', space=vmem, size = 0x1000, scoped, tag = 'input window, operand 1, single buffered']
    #allocation6 [shape = 's32[1]{0}', space=sflag, size = 0x4, scoped, tag = 'scoped memory for tpu_custom_call.1']
    #allocation7 [shape = 'u8[16384]{0}', space=vmem, size = 0x4000, scoped, tag = 'input window, operand 2, single buffered']
    #allocation8 [shape = 'u8[65536]{0}', space=vmem, size = 0x10000, scoped, tag = 'input window, operand 3, single buffered']
    #allocation9 [shape = 's32[1]{0}', space=sflag, size = 0x4, scoped, tag = 'scoped memory for tpu_custom_call.1']
    #allocation10 [shape = 'u8[4096]{0}', space=vmem, size = 0x1000, scoped, tag = 'output window, operand 0, single buffered']
    %9 = vsyncpa [#allocation3], 0
    %10 = vsyncpa [#allocation6], 0
    %11 = vsyncpa [#allocation9], 0
    %12 = vsyncpa [#allocation4], 0
    // Predicated region
    $region2: #{tpu_custom_call.1} parent=1 // pred_check
      _
    $region3: #{tpu_custom_call.1} parent=1 // pred_check_branch
      %14 = sbr.rel (0) target = $region5
    $region4: #{tpu_custom_call.1} parent=1 // pred_region
      %16 = vsyncadd [#allocation3], 0
      %s18 = sshll.u32 %s0, 4
      %s19 = int_to_ptr.hbm [resolvable:$true] %s18
      %s20 = sshll.u32 [#allocation2], 4
      %s21 = int_to_ptr.vmem [resolvable:$true] %s20
      %23 = dma.hbm_to_vmem [thread:$0]  %s19, 64, %s21, [#allocation3]
    $region5: #{tpu_custom_call.1} parent=1 // pred_fallthru
      _
    // Predicated region
    $region6: #{tpu_custom_call.1} parent=1 // pred_check
      _
    $region7: #{tpu_custom_call.1} parent=1 // pred_check_branch
      %25 = sbr.rel (0) target = $region9
    $region8: #{tpu_custom_call.1} parent=1 // pred_region
      %27 = vsyncadd [#allocation6], 0
      %s29 = sshll.u32 %s1, 4
      %s30 = int_to_ptr.hbm [resolvable:$true] %s29
      %s31 = sshll.u32 [#allocation5], 4
      %s32 = int_to_ptr.vmem [resolvable:$true] %s31
      %34 = dma.hbm_to_vmem [thread:$0]  %s30, 128, %s32, [#allocation6]
    $region9: #{tpu_custom_call.1} parent=1 // pred_fallthru
      _
    // Predicated region
    $region10: #{tpu_custom_call.1} parent=1 // pred_check
      _
    $region11: #{tpu_custom_call.1} parent=1 // pred_check_branch
      %36 = sbr.rel (0) target = $region13
    $region12: #{tpu_custom_call.1} parent=1 // pred_region
      %38 = vsyncadd [#allocation6], 0
      %s39 = sshll.u32 %s2, 4
      %s40 = int_to_ptr.hbm [resolvable:$true] %s39
      %s41 = sshll.u32 [#allocation7], 4
      %s42 = int_to_ptr.vmem [resolvable:$true] %s41
      %47 = dma.hbm_to_vmem [thread:$0]  %s40, 512, %s42, [#allocation6], 128, 128, 8
    $region13: #{tpu_custom_call.1} parent=1 // pred_fallthru
      _
    // Predicated region
    $region14: #{tpu_custom_call.1} parent=1 // pred_check
      _
    $region15: #{tpu_custom_call.1} parent=1 // pred_check_branch
      %49 = sbr.rel (0) target = $region17
    $region16: #{tpu_custom_call.1} parent=1 // pred_region
      %51 = vsyncadd [#allocation9], 0
      %s52 = sshll.u32 %s3, 4
      %s53 = int_to_ptr.hbm [resolvable:$true] %s52
      %s54 = sshll.u32 [#allocation8], 4
      %s55 = int_to_ptr.vmem [resolvable:$true] %s54
      %60 = dma.hbm_to_vmem [thread:$0]  %s53, 2048, %s55, [#allocation9], 64, 64, 4
    $region17: #{tpu_custom_call.1} parent=1 // pred_fallthru
      _
    // Predicated region
    $region18: #{tpu_custom_call.1} parent=1 // pred_check
      _
    $region19: #{tpu_custom_call.1} parent=1 // pred_check_branch
      %62 = sbr.rel (0) target = $region21
    $region20: #{tpu_custom_call.1} parent=1 // pred_region
      %64 = dma.done [#allocation3], 64
    $region21: #{tpu_custom_call.1} parent=1 // pred_fallthru
      _
    // Predicated region
    $region22: #{tpu_custom_call.1} parent=1 // pred_check
      _
    $region23: #{tpu_custom_call.1} parent=1 // pred_check_branch
      %66 = sbr.rel (0) target = $region25
    $region24: #{tpu_custom_call.1} parent=1 // pred_region
      %68 = dma.done [#allocation6], 128
    $region25: #{tpu_custom_call.1} parent=1 // pred_fallthru
      _
    // Predicated region
    $region26: #{tpu_custom_call.1} parent=1 // pred_check
      _
    $region27: #{tpu_custom_call.1} parent=1 // pred_check_branch
      %70 = sbr.rel (0) target = $region29
    $region28: #{tpu_custom_call.1} parent=1 // pred_region
      %72 = dma.done [#allocation6], 512
    $region29: #{tpu_custom_call.1} parent=1 // pred_fallthru
      _
    // Predicated region
    $region30: #{tpu_custom_call.1} parent=1 // pred_check
      _
    $region31: #{tpu_custom_call.1} parent=1 // pred_check_branch
      %74 = sbr.rel (0) target = $region33
    $region32: #{tpu_custom_call.1} parent=1 // pred_region
      %76 = dma.done [#allocation9], 2048
    $region33: #{tpu_custom_call.1} parent=1 // pred_fallthru
      _
    %v78 = vld [vmem:[#allocation5] sm:$0xff]
    %v79 = vpack.c.bf16 %v78, %v78
    %v80 = vld [vmem:[#allocation2] sm:$0xf]
    %v81 = vld [vmem:[#allocation7] sm:$0xff]
    %v82 = vld [vmem:[#allocation7 + $0x8] sm:$0xff]
    %v83 = vld [vmem:[#allocation7 + $0x10] sm:$0xff]
    %v84 = vld [vmem:[#allocation7 + $0x18] sm:$0x11]
    %v89 = vunpack.c.l.b16 %v81
    %v90 = vunpack.c.h.b16 %v81
    %v91 = vunpack.c.l.b16 %v82
    %v92 = vunpack.c.h.b16 %v82
    %v93 = vunpack.c.l.b16 %v83
    %v94 = vunpack.c.h.b16 %v83
    %v95 = vunpack.c.l.b16 %v84
    %v96 = vunpack.c.h.b16 %v84
    %v97 = vpack.c.b16 %v91, %v89
    %v98 = vpack.c.b16 %v92, %v90
    %v99 = vpack.c.b16 %v95, %v93
    %v100 = vpack.c.b16 %v96, %v94
    %vm103 = vcmask 203776
    %v105 = vsel %vm103, %v80, 0
    %vm107 = vcmask 1043456
    %vm108 = vcmask 1044480
    %v109 = vsel %vm107, 4294967295, 65535
    %v110 = vsel %vm108, %v109, 0
    %v112 = vand.u32 %v99, %v110
    %v115 = vand.u32 %v100, %v110
    %117 = vmatpush.bf16.msra.mxu0 0
    %118 = vmatpush.bf16.msra.mxu0 0
    %119 = vmatpush.bf16.msra.mxu0 0
    %120 = vmatpush.bf16.msra.mxu0 0
    %121 = vmatpush.bf16.msra.mxu0 0
    %122 = vmatpush.bf16.msra.mxu0 0
    %123 = vmatpush.bf16.msra.mxu0 %v112
    %124 = vmatpush.bf16.msra.mxu0 %v97
    %125 = vmatmul.bf16.gmra.mxu0 %v105
    %v126 = vpop.f32.mrf.mxu0
    %v127 = vadd.f32 0.0, %v126
    %v128 = vpop.f32.mrf.mxu0
    %129 = vdwg.mxu0
    %130 = vmatpush.bf16.msra.mxu0 0
    %131 = vmatpush.bf16.msra.mxu0 0
    %132 = vmatpush.bf16.msra.mxu0 0
    %133 = vmatpush.bf16.msra.mxu0 0
    %134 = vmatpush.bf16.msra.mxu0 0
    %135 = vmatpush.bf16.msra.mxu0 0
    %136 = vmatpush.bf16.msra.mxu0 %v115
    %137 = vmatpush.bf16.msra.mxu0 %v98
    %138 = vmatmul.bf16.gmra.mxu0 %v105
    %v139 = vpop.f32.mrf.mxu0
    %v140 = vadd.f32 0.0, %v139
    %v141 = vpop.f32.mrf.mxu0
    %142 = vdwg.mxu0
    %v143 = vld [vmem:[#allocation8] sm:$0xf]
    %v144 = vld [vmem:[#allocation8 + $0x4] sm:$0xf]
    %v145 = vld [vmem:[#allocation8 + $0x8] sm:$0xf]
    %v146 = vld [vmem:[#allocation8 + $0xc] sm:$0xf]
    %v147 = vld [vmem:[#allocation8 + $0x10] sm:$0xf]
    %v148 = vld [vmem:[#allocation8 + $0x14] sm:$0xf]
    %v149 = vld [vmem:[#allocation8 + $0x18] sm:$0xf]
    %v150 = vld [vmem:[#allocation8 + $0x1c] sm:$0xf]
    %v151 = vld [vmem:[#allocation8 + $0x20] sm:$0xf]
    %v152 = vld [vmem:[#allocation8 + $0x24] sm:$0xf]
    %v153 = vld [vmem:[#allocation8 + $0x28] sm:$0xf]
    %v154 = vld [vmem:[#allocation8 + $0x2c] sm:$0xf]
    %v155 = vld [vmem:[#allocation8 + $0x30] sm:$0xf]
    %v156 = vld [vmem:[#allocation8 + $0x34] sm:$0xf]
    %v157 = vld [vmem:[#allocation8 + $0x38] sm:$0xf]
    %v158 = vld [vmem:[#allocation8 + $0x3c] sm:$0xf]
    %v175 = vunpack.c.l.b16 %v143
    %v176 = vunpack.c.l.b16 %v144
    %v177 = vunpack.c.l.b16 %v145
    %v178 = vunpack.c.l.b16 %v146
    %v179 = vunpack.c.l.b16 %v147
    %v180 = vunpack.c.l.b16 %v148
    %v181 = vunpack.c.l.b16 %v149
    %v182 = vunpack.c.l.b16 %v150
    %v183 = vunpack.c.l.b16 %v151
    %v184 = vunpack.c.l.b16 %v152
    %v185 = vunpack.c.l.b16 %v153
    %v186 = vunpack.c.l.b16 %v154
    %v187 = vunpack.c.l.b16 %v155
    %v188 = vunpack.c.l.b16 %v156
    %v189 = vunpack.c.l.b16 %v157
    %v190 = vunpack.c.l.b16 %v158
    %v191 = vpack.c.b16 %v176, %v175
    %v192 = vpack.c.b16 %v178, %v177
    %v193 = vpack.c.b16 %v180, %v179
    %v194 = vpack.c.b16 %v182, %v181
    %v195 = vpack.c.b16 %v184, %v183
    %v196 = vpack.c.b16 %v186, %v185
    %v197 = vpack.c.b16 %v188, %v187
    %v198 = vpack.c.b16 %v190, %v189
    %207 = vmatpush.bf16.msra.mxu0 %v198
    %208 = vmatpush.bf16.msra.mxu0 %v197
    %209 = vmatpush.bf16.msra.mxu0 %v196
    %210 = vmatpush.bf16.msra.mxu0 %v195
    %211 = vmatpush.bf16.msra.mxu0 %v194
    %212 = vmatpush.bf16.msra.mxu0 %v193
    %213 = vmatpush.bf16.msra.mxu0 %v192
    %214 = vmatpush.bf16.msra.mxu0 %v191
    %215 = vmatmul.bf16.gmra.mxu0 %v79
    %v216 = vpop.f32.mrf.mxu0
    %v217 = vadd.f32 0.0, %v216
    %v218 = vpop.f32.mrf.mxu0
    %219 = vdwg.mxu0
    %v220 = vadd.f32 %v127, %v217
    %v221 = vxor.u32 %v220, 2147483648
    %v222 = vmul.f32 %v221, 1.442695
    %v223 = vpow.pop %v222
    %v224 = vadd.f32 %v223, 1.0
    %v225 = vrcp.pop %v224
    %v226 = vmul.f32 %v224, %v225
    %v227 = vsub.f32 1.0, %v226
    %v228 = vmul.f32 %v225, %v227
    %v229 = vadd.f32 %v225, %v228
    %vm230 = vweird.f32 %v224
    %vm231 = vweird.f32 %v225
    %vm232 = vmor %vm230, %vm231
    %v233 = vsel %vm232, %v225, %v229
    %v234 = vand.u32 2147483647, %v224
    %vm235 = vcmp.eq.f32.partialorder %v234, 8.507059e+37
    %v236 = vand.u32 %v224, 2147483648
    %v237 = vor.u32 1.1754944e-38, %v236
    %v238 = vsel %vm235, %v237, %v233
    %v239 = vmul.f32 1.0, %v238
    %v240 = vmul.f32 %v239, %v78
    %v241 = vpack.c.bf16 %v240, %v240
    %s242 = scalar_lea.vmem [#allocation8], 64
    %v243 = vld [vmem:[%s242] sm:$0xf]
    %v244 = vld [vmem:[%s242 + $0x4] sm:$0xf]
    %v245 = vld [vmem:[%s242 + $0x8] sm:$0xf]
    %v246 = vld [vmem:[%s242 + $0xc] sm:$0xf]
    %v247 = vld [vmem:[%s242 + $0x10] sm:$0xf]
    %v248 = vld [vmem:[%s242 + $0x14] sm:$0xf]
    %v249 = vld [vmem:[%s242 + $0x18] sm:$0xf]
    %v250 = vld [vmem:[%s242 + $0x1c] sm:$0xf]
    %v251 = vld [vmem:[%s242 + $0x20] sm:$0xf]
    %v252 = vld [vmem:[%s242 + $0x24] sm:$0xf]
    %v253 = vld [vmem:[%s242 + $0x28] sm:$0xf]
    %v254 = vld [vmem:[%s242 + $0x2c] sm:$0xf]
    %v255 = vld [vmem:[%s242 + $0x30] sm:$0xf]
    %v256 = vld [vmem:[%s242 + $0x34] sm:$0xf]
    %v257 = vld [vmem:[%s242 + $0x38] sm:$0xf]
    %v258 = vld [vmem:[%s242 + $0x3c] sm:$0xf]
    %v275 = vunpack.c.l.b16 %v243
    %v276 = vunpack.c.l.b16 %v244
    %v277 = vunpack.c.l.b16 %v245
    %v278 = vunpack.c.l.b16 %v246
    %v279 = vunpack.c.l.b16 %v247
    %v280 = vunpack.c.l.b16 %v248
    %v281 = vunpack.c.l.b16 %v249
    %v282 = vunpack.c.l.b16 %v250
    %v283 = vunpack.c.l.b16 %v251
    %v284 = vunpack.c.l.b16 %v252
    %v285 = vunpack.c.l.b16 %v253
    %v286 = vunpack.c.l.b16 %v254
    %v287 = vunpack.c.l.b16 %v255
    %v288 = vunpack.c.l.b16 %v256
    %v289 = vunpack.c.l.b16 %v257
    %v290 = vunpack.c.l.b16 %v258
    %v291 = vpack.c.b16 %v276, %v275
    %v292 = vpack.c.b16 %v278, %v277
    %v293 = vpack.c.b16 %v280, %v279
    %v294 = vpack.c.b16 %v282, %v281
    %v295 = vpack.c.b16 %v284, %v283
    %v296 = vpack.c.b16 %v286, %v285
    %v297 = vpack.c.b16 %v288, %v287
    %v298 = vpack.c.b16 %v290, %v289
    %307 = vmatpush.bf16.msra.mxu0 %v298
    %308 = vmatpush.bf16.msra.mxu0 %v297
    %309 = vmatpush.bf16.msra.mxu0 %v296
    %310 = vmatpush.bf16.msra.mxu0 %v295
    %311 = vmatpush.bf16.msra.mxu0 %v294
    %312 = vmatpush.bf16.msra.mxu0 %v293
    %313 = vmatpush.bf16.msra.mxu0 %v292
    %314 = vmatpush.bf16.msra.mxu0 %v291
    %315 = vmatmul.bf16.gmra.mxu0 %v241
    %v316 = vpop.f32.mrf.mxu0
    %v317 = vadd.f32 0.0, %v316
    %v318 = vpop.f32.mrf.mxu0
    %319 = vdwg.mxu0
    %v320 = vadd.f32 %v140, %v317
    %v321 = vtanh.pop %v320
    %v322 = vsub.f32 %v321, %v78
    %v323 = vmul.f32 %v239, %v322
    %v324 = vadd.f32 %v78, %v323
    %325 = vst [vmem:[#allocation10] sm:$0xff] %v324
    // Predicated region
    $region34: #{tpu_custom_call.1} parent=1 // pred_check
      _
    $region35: #{tpu_custom_call.1} parent=1 // pred_check_branch
      %327 = sbr.rel (0) target = $region37
    $region36: #{tpu_custom_call.1} parent=1 // pred_region
      %329 = vsyncadd [#allocation4], 0
      %s331 = sshll.u32 [#allocation10], 4
      %s332 = int_to_ptr.vmem [resolvable:$true] %s331
      %s333 = sshll.u32 %s4, 4
      %s334 = int_to_ptr.hbm [resolvable:$true] %s333
      %336 = dma.vmem_to_hbm [thread:$0]  %s332, 128, %s334, [#allocation4]
    $region37: #{tpu_custom_call.1} parent=1 // pred_fallthru
      _
    // Predicated region
    $region38: #{tpu_custom_call.1} parent=1 // pred_check
      _
    $region39: #{tpu_custom_call.1} parent=1 // pred_check_branch
      %338 = sbr.rel (0) target = $region41
    $region40: #{tpu_custom_call.1} parent=1 // pred_region
      %340 = dma.done [#allocation4], 128
    $region41: #{tpu_custom_call.1} parent=1 // pred_fallthru
      _
    %341 = vsyncpa [#allocation3], 1
    %342 = vsyncpa [#allocation6], 1
    %343 = vsyncpa [#allocation9], 1
    %344 = vsyncpa [#allocation4], 1

</llo_original>
